<compile_context>
chip_gen: v5e
topology: v5e:2x2
jax: 0.10.0
libtpu: 0.0.40
codegen_flags: <defaults>
</compile_context>

<pallas_src>
import jax
import jax.numpy as jnp
from jax.experimental import pallas as pl
from jax.experimental.pallas import tpu as pltpu

IN_FEATURES = 21 * 2   # 42
HIDDEN1 = 20
HIDDEN2 = 10
NUM_CLASSES = 5
NUM_CLASSES_PAD = 128  # lane-dense output width (sliced back to 5 in the wrapper)
TILE_B_DEFAULT = 1024  # rows per grid step (multiple of 8; ~170 KB x-tile)


def _round_up(n, m):
    return (n + m - 1) // m * m


def _mlp_kernel(x_ref, w1_ref, b1_ref, w2_ref, b2_ref, w3_ref, b3_ref, o_ref):
    # Whole forward pass fused into one kernel: Linear -> ReLU -> Linear -> ReLU -> Linear
    x = x_ref[...]
    h1 = jnp.dot(x, w1_ref[...], preferred_element_type=jnp.float32) + b1_ref[...]
    h1 = jnp.maximum(h1, 0.0)
    h2 = jnp.dot(h1, w2_ref[...], preferred_element_type=jnp.float32) + b2_ref[...]
    h2 = jnp.maximum(h2, 0.0)
    out = jnp.dot(h2, w3_ref[...], preferred_element_type=jnp.float32) + b3_ref[...]
    o_ref[...] = out.astype(o_ref.dtype)


def keypoint_classifier_forward(x, params, *, tile_b=TILE_B_DEFAULT):
    """x: (batch, 42) float32. params: dict of w1,b1,w2,b2,w3,b3 (W stored as (in, out))."""
    w1, b1, w2, b2, w3, b3 = (params[k] for k in ("w1", "b1", "w2", "b2", "w3", "b3"))
    batch = x.shape[0]

    # Sublane-aligned batch tile; don't over-tile tiny batches.
    tile_b = min(tile_b, _round_up(batch, 8))
    padded_batch = _round_up(batch, tile_b)
    if padded_batch != batch:
        x = jnp.pad(x, ((0, padded_batch - batch), (0, 0)))

    # Zero-pad the last layer to 128 output columns so stores are full-lane-width.
    w3p = jnp.pad(w3, ((0, 0), (0, NUM_CLASSES_PAD - NUM_CLASSES)))
    b3p = jnp.pad(b3, ((0, 0), (0, NUM_CLASSES_PAD - NUM_CLASSES)))

    grid = (padded_batch // tile_b,)

    resident = lambda shape: pl.BlockSpec(shape, lambda i: tuple(0 for _ in shape))

    out = pl.pallas_call(
        _mlp_kernel,
        out_shape=jax.ShapeDtypeStruct((padded_batch, NUM_CLASSES_PAD), jnp.float32),
        grid=grid,
        in_specs=[
            pl.BlockSpec((tile_b, IN_FEATURES), lambda i: (i, 0)),  # batch-tiled x
            resident(w1.shape), resident(b1.shape),
            resident(w2.shape), resident(b2.shape),
            resident(w3p.shape), resident(b3p.shape),
        ],
        out_specs=pl.BlockSpec((tile_b, NUM_CLASSES_PAD), lambda i: (i, 0)),
        compiler_params=pltpu.CompilerParams(dimension_semantics=("parallel",)),
    )(x, w1, b1, w2, b2, w3p, b3p)

    return out[:batch, :NUM_CLASSES]


def init_params(key):
    """Deterministic synthetic parameters matching nn.Linear shapes.

    PyTorch nn.Linear(in, out) holds weight (out, in); we store the transpose
    (in, out) so the kernel does x @ W directly.
    """
    ks = jax.random.split(key, 6)

    def linear(kw, kb, fan_in, fan_out):
        bound = 1.0 / jnp.sqrt(jnp.float32(fan_in))
        w = jax.random.uniform(kw, (fan_in, fan_out), jnp.float32, -bound, bound)
        b = jax.random.uniform(kb, (1, fan_out), jnp.float32, -bound, bound)
        return w, b

    w1, b1 = linear(ks[0], ks[1], IN_FEATURES, HIDDEN1)
    w2, b2 = linear(ks[2], ks[3], HIDDEN1, HIDDEN2)
    w3, b3 = linear(ks[4], ks[5], HIDDEN2, NUM_CLASSES)
    return {"w1": w1, "b1": b1, "w2": w2, "b2": b2, "w3": w3, "b3": b3}


if __name__ == "__main__":
    key = jax.random.PRNGKey(0)
    k_params, k_x = jax.random.split(key)

    params = init_params(k_params)
    batch = 8
    x = jax.random.normal(k_x, (batch, IN_FEATURES), dtype=jnp.float32)

    out = keypoint_classifier_forward(x, params)
    out = jax.block_until_ready(out)

    # Reference check in plain JAX (same math, eval-mode dropout = identity).
    h1 = jnp.maximum(x @ params["w1"] + params["b1"], 0.0)
    h2 = jnp.maximum(h1 @ params["w2"] + params["b2"], 0.0)
    ref = h2 @ params["w3"] + params["b3"]
    assert out.shape == (batch, NUM_CLASSES)
    assert jnp.allclose(out, ref, atol=1e-5, rtol=1e-5)

    # Also exercise the multi-tile / ragged-batch path.
    batch2 = 2049  # not a multiple of the tile -> padded internally
    x2 = jax.random.normal(jax.random.PRNGKey(1), (batch2, IN_FEATURES), dtype=jnp.float32)
    out2 = jax.block_until_ready(keypoint_classifier_forward(x2, params, tile_b=512))
    h1 = jnp.maximum(x2 @ params["w1"] + params["b1"], 0.0)
    h2 = jnp.maximum(h1 @ params["w2"] + params["b2"], 0.0)
    ref2 = h2 @ params["w3"] + params["b3"]
    assert out2.shape == (batch2, NUM_CLASSES)
    assert jnp.allclose(out2, ref2, atol=1e-4, rtol=1e-4)

    print("KERNEL_OK")
</pallas_src>

<mosaic_0001>
module attributes {stable_mosaic.version = 11 : i64} {
  func.func @_mlp_kernel(%arg0: i32, %arg1: memref<8x42xf32, #tpu.memory_space<vmem>>, %arg2: memref<42x20xf32, #tpu.memory_space<vmem>>, %arg3: memref<1x20xf32, #tpu.memory_space<vmem>>, %arg4: memref<20x10xf32, #tpu.memory_space<vmem>>, %arg5: memref<1x10xf32, #tpu.memory_space<vmem>>, %arg6: memref<10x128xf32, #tpu.memory_space<vmem>>, %arg7: memref<1x128xf32, #tpu.memory_space<vmem>>, %arg8: memref<8x128xf32, #tpu.memory_space<vmem>>) attributes {dimension_semantics = [#tpu.dimension_semantics<parallel>], iteration_bounds = array<i64: 1>, scalar_prefetch = 0 : i64, scratch_operands = 0 : i64, tpu.core_type = #tpu.core_type<tc>, window_params = [{transform_indices = @transform_0, window_bounds = array<i64: 8, 42>}, {pipeline_mode = #tpu.pipeline_mode<synchronous>, transform_indices = @transform_1, window_bounds = array<i64: 42, 20>}, {pipeline_mode = #tpu.pipeline_mode<synchronous>, transform_indices = @transform_2, window_bounds = array<i64: 1, 20>}, {pipeline_mode = #tpu.pipeline_mode<synchronous>, transform_indices = @transform_3, window_bounds = array<i64: 20, 10>}, {pipeline_mode = #tpu.pipeline_mode<synchronous>, transform_indices = @transform_4, window_bounds = array<i64: 1, 10>}, {pipeline_mode = #tpu.pipeline_mode<synchronous>, transform_indices = @transform_5, window_bounds = array<i64: 10, 128>}, {pipeline_mode = #tpu.pipeline_mode<synchronous>, transform_indices = @transform_6, window_bounds = array<i64: 1, 128>}, {transform_indices = @transform_7, window_bounds = array<i64: 8, 128>}]} {
    %c0 = arith.constant 0 : index
    %c0_0 = arith.constant 0 : index
    %0 = vector.load %arg1[%c0, %c0_0] : memref<8x42xf32, #tpu.memory_space<vmem>>, vector<8x42xf32>
    %c0_1 = arith.constant 0 : index
    %c0_2 = arith.constant 0 : index
    %1 = vector.load %arg2[%c0_1, %c0_2] : memref<42x20xf32, #tpu.memory_space<vmem>>, vector<42x20xf32>
    %cst = arith.constant dense<0.000000e+00> : vector<8x20xf32>
    %2 = tpu.matmul %0, %1, %cst {dimension_numbers = #tpu.dot_dimension_numbers<[1], [0], [0], [1], [0, 0, 1, 1], [], []>} : vector<8x42xf32>, vector<42x20xf32>, vector<8x20xf32> -> vector<8x20xf32>
    %c0_3 = arith.constant 0 : index
    %c0_4 = arith.constant 0 : index
    %3 = vector.load %arg3[%c0_3, %c0_4] : memref<1x20xf32, #tpu.memory_space<vmem>>, vector<1x20xf32>
    %4 = vector.broadcast %3 : vector<1x20xf32> to vector<8x20xf32>
    %5 = arith.addf %2, %4 : vector<8x20xf32>
    %cst_5 = arith.constant 0.000000e+00 : f32
    %6 = vector.broadcast %cst_5 : f32 to vector<8x20xf32>
    %7 = arith.maximumf %5, %6 : vector<8x20xf32>
    %c0_6 = arith.constant 0 : index
    %c0_7 = arith.constant 0 : index
    %8 = vector.load %arg4[%c0_6, %c0_7] : memref<20x10xf32, #tpu.memory_space<vmem>>, vector<20x10xf32>
    %cst_8 = arith.constant dense<0.000000e+00> : vector<8x10xf32>
    %9 = tpu.matmul %7, %8, %cst_8 {dimension_numbers = #tpu.dot_dimension_numbers<[1], [0], [0], [1], [0, 0, 1, 1], [], []>} : vector<8x20xf32>, vector<20x10xf32>, vector<8x10xf32> -> vector<8x10xf32>
    %c0_9 = arith.constant 0 : index
    %c0_10 = arith.constant 0 : index
    %10 = vector.load %arg5[%c0_9, %c0_10] : memref<1x10xf32, #tpu.memory_space<vmem>>, vector<1x10xf32>
    %11 = vector.broadcast %10 : vector<1x10xf32> to vector<8x10xf32>
    %12 = arith.addf %9, %11 : vector<8x10xf32>
    %cst_11 = arith.constant 0.000000e+00 : f32
    %13 = vector.broadcast %cst_11 : f32 to vector<8x10xf32>
    %14 = arith.maximumf %12, %13 : vector<8x10xf32>
    %c0_12 = arith.constant 0 : index
    %c0_13 = arith.constant 0 : index
    %15 = vector.load %arg6[%c0_12, %c0_13] : memref<10x128xf32, #tpu.memory_space<vmem>>, vector<10x128xf32>
    %cst_14 = arith.constant dense<0.000000e+00> : vector<8x128xf32>
    %16 = tpu.matmul %14, %15, %cst_14 {dimension_numbers = #tpu.dot_dimension_numbers<[1], [0], [0], [1], [0, 0, 1, 1], [], []>} : vector<8x10xf32>, vector<10x128xf32>, vector<8x128xf32> -> vector<8x128xf32>
    %c0_15 = arith.constant 0 : index
    %c0_16 = arith.constant 0 : index
    %17 = vector.load %arg7[%c0_15, %c0_16] : memref<1x128xf32, #tpu.memory_space<vmem>>, vector<1x128xf32>
    %18 = vector.broadcast %17 : vector<1x128xf32> to vector<8x128xf32>
    %19 = arith.addf %16, %18 : vector<8x128xf32>
    %c0_17 = arith.constant 0 : index
    %c0_18 = arith.constant 0 : index
    %20 = vector.load %arg8[%c0_17, %c0_18] : memref<8x128xf32, #tpu.memory_space<vmem>>, vector<8x128xf32>
    tpu.vector_store %arg8[%c0_17, %c0_18], %19 {strides = array<i32>} : memref<8x128xf32, #tpu.memory_space<vmem>>, vector<8x128xf32>,
    return
  }
  func.func @transform_0(%arg0: i32) -> (i32, i32) {
    %c0_i32 = arith.constant 0 : i32
    %c0_i32_0 = arith.constant 0 : i32
    return %arg0, %c0_i32 : i32, i32
  }
  func.func @transform_1(%arg0: i32) -> (i32, i32) {
    %c0_i32 = arith.constant 0 : i32
    %c0_i32_0 = arith.constant 0 : i32
    %c0_i32_1 = arith.constant 0 : i32
    return %c0_i32, %c0_i32_0 : i32, i32
  }
  func.func @transform_2(%arg0: i32) -> (i32, i32) {
    %c0_i32 = arith.constant 0 : i32
    %c0_i32_0 = arith.constant 0 : i32
    %c0_i32_1 = arith.constant 0 : i32
    return %c0_i32, %c0_i32_0 : i32, i32
  }
  func.func @transform_3(%arg0: i32) -> (i32, i32) {
    %c0_i32 = arith.constant 0 : i32
    %c0_i32_0 = arith.constant 0 : i32
    %c0_i32_1 = arith.constant 0 : i32
    return %c0_i32, %c0_i32_0 : i32, i32
  }
  func.func @transform_4(%arg0: i32) -> (i32, i32) {
    %c0_i32 = arith.constant 0 : i32
    %c0_i32_0 = arith.constant 0 : i32
    %c0_i32_1 = arith.constant 0 : i32
    return %c0_i32, %c0_i32_0 : i32, i32
  }
  func.func @transform_5(%arg0: i32) -> (i32, i32) {
    %c0_i32 = arith.constant 0 : i32
    %c0_i32_0 = arith.constant 0 : i32
    %c0_i32_1 = arith.constant 0 : i32
    return %c0_i32, %c0_i32_0 : i32, i32
  }
  func.func @transform_6(%arg0: i32) -> (i32, i32) {
    %c0_i32 = arith.constant 0 : i32
    %c0_i32_0 = arith.constant 0 : i32
    %c0_i32_1 = arith.constant 0 : i32
    return %c0_i32, %c0_i32_0 : i32, i32
  }
  func.func @transform_7(%arg0: i32) -> (i32, i32) {
    %c0_i32 = arith.constant 0 : i32
    %c0_i32_0 = arith.constant 0 : i32
    return %arg0, %c0_i32 : i32, i32
  }
}

</mosaic_0001>

<llo_original>
// kernel: tpu_custom_call.1
$region0: #{tpu_custom_call.1}
  #allocation0 [shape = 'u32[]', space=smem, size = 0x4, offset = 0x4, fixed_abs, tag = 'smem constant byte address 0x4 - core index']
  #allocation1 [shape = 'u32[72,128]{1,0:T(1,128)}', space=vmem, size = 0x9000, scoped, tag = 'internal scratch']
  %s0 = inlined_call_operand.vmem [shape: f32[8,42], index: 0, kind: input, shape index: {}]
  %s1 = inlined_call_operand.vmem [shape: f32[42,20], index: 1, kind: input, shape index: {}]
  %s2 = inlined_call_operand.vmem [shape: f32[1,20], index: 2, kind: input, shape index: {}]
  %s3 = inlined_call_operand.vmem [shape: f32[20,10], index: 3, kind: input, shape index: {}]
  %s4 = inlined_call_operand.vmem [shape: f32[1,10], index: 4, kind: input, shape index: {}]
  %s5 = inlined_call_operand.vmem [shape: f32[10,128], index: 5, kind: input, shape index: {}]
  %s6 = inlined_call_operand.vmem [shape: f32[1,128], index: 6, kind: input, shape index: {}]
  %s7 = inlined_call_operand.hbm [shape: f32[8,128], index: 7, kind: output, shape index: {}]
  %s8 = sld [smem:[#allocation0]]
  $region38: #{tpu_custom_call.1} parent=0
    _
  %s10 = ssub.s32 1, %s8
  %s11 = scalar_select 0, %s10, %s8
  $region1: #{tpu_custom_call.1} parent=0
    #allocation2 [shape = 'u8[4096]{0}', space=vmem, size = 0x1000, scoped, tag = 'output window, operand 0, single buffered']
    #allocation3 [shape = 's32[1]{0}', space=sflag, size = 0x4, scoped, tag = 'scoped memory for tpu_custom_call.1']
    %12 = vsyncpa [#allocation3], 0
    // Predicated region
    $region2: #{tpu_custom_call.1} parent=1 // pred_check
      _
    $region3: #{tpu_custom_call.1} parent=1 // pred_check_branch
      %14 = sbr.rel (0) target = $region5
    $region4: #{tpu_custom_call.1} parent=1 // pred_region
      _
    $region5: #{tpu_custom_call.1} parent=1 // pred_fallthru
      _
    // Predicated region
    $region6: #{tpu_custom_call.1} parent=1 // pred_check
      _
    $region7: #{tpu_custom_call.1} parent=1 // pred_check_branch
      %16 = sbr.rel (0) target = $region9
    $region8: #{tpu_custom_call.1} parent=1 // pred_region
      _
    $region9: #{tpu_custom_call.1} parent=1 // pred_fallthru
      _
    // Predicated region
    $region10: #{tpu_custom_call.1} parent=1 // pred_check
      _
    $region11: #{tpu_custom_call.1} parent=1 // pred_check_branch
      %18 = sbr.rel (0) target = $region13
    $region12: #{tpu_custom_call.1} parent=1 // pred_region
      _
    $region13: #{tpu_custom_call.1} parent=1 // pred_fallthru
      _
    // Predicated region
    $region14: #{tpu_custom_call.1} parent=1 // pred_check
      _
    $region15: #{tpu_custom_call.1} parent=1 // pred_check_branch
      %20 = sbr.rel (0) target = $region17
    $region16: #{tpu_custom_call.1} parent=1 // pred_region
      _
    $region17: #{tpu_custom_call.1} parent=1 // pred_fallthru
      _
    // Predicated region
    $region18: #{tpu_custom_call.1} parent=1 // pred_check
      _
    $region19: #{tpu_custom_call.1} parent=1 // pred_check_branch
      %22 = sbr.rel (0) target = $region21
    $region20: #{tpu_custom_call.1} parent=1 // pred_region
      _
    $region21: #{tpu_custom_call.1} parent=1 // pred_fallthru
      _
    // Predicated region
    $region22: #{tpu_custom_call.1} parent=1 // pred_check
      _
    $region23: #{tpu_custom_call.1} parent=1 // pred_check_branch
      %24 = sbr.rel (0) target = $region25
    $region24: #{tpu_custom_call.1} parent=1 // pred_region
      _
    $region25: #{tpu_custom_call.1} parent=1 // pred_fallthru
      _
    // Predicated region
    $region26: #{tpu_custom_call.1} parent=1 // pred_check
      _
    $region27: #{tpu_custom_call.1} parent=1 // pred_check_branch
      %26 = sbr.rel (0) target = $region29
    $region28: #{tpu_custom_call.1} parent=1 // pred_region
      _
    $region29: #{tpu_custom_call.1} parent=1 // pred_fallthru
      _
    %v27 = vld [vmem:[%s0] sm:$0xff]
    %v28 = vld [vmem:[%s1] sm:$0xff]
    %v29 = vld [vmem:[%s1 + $0x8] sm:$0xff]
    %v30 = vld [vmem:[%s1 + $0x10] sm:$0xff]
    %v31 = vld [vmem:[%s1 + $0x18] sm:$0xff]
    %v32 = vld [vmem:[%s1 + $0x20] sm:$0xff]
    %v33 = vld [vmem:[%s1 + $0x28] sm:$0x3]
    %v34 = vld [vmem:[%s2] sm:$0x1]
    %v36 = vperm.slane %v34, 0
    %vm38 = vcmask 343040
    %v40 = vsel %vm38, %v27, 0
    %vm42 = vcmask 1041408
    %v44 = vsel %vm42, %v33, 0
    %46 = vmatpush.msra.mxu0 0.0
    %47 = vmatpush.msra.mxu0 0.0
    %48 = vmatpush.msra.mxu0 0.0
    %49 = vmatpush.msra.mxu0 0.0
    %50 = vmatpush.msra.mxu0 0.0
    %51 = vmatpush.msra.mxu0 0.0
    %52 = vmatpush.msra.mxu0 0.0
    %53 = vmatpush.msra.mxu0 0.0
    %54 = vmatpush.msra.mxu0 0.0
    %55 = vmatpush.msra.mxu0 0.0
    %56 = vmatpush.msra.mxu0 %v44
    %57 = vmatpush.msra.mxu0 %v32
    %58 = vmatpush.msra.mxu0 %v31
    %59 = vmatpush.msra.mxu0 %v30
    %60 = vmatpush.msra.mxu0 %v29
    %61 = vmatpush.msra.mxu0 %v28
    %62 = vmatmul.f32.gmra.mxu0 %v40
    %v63 = vpop.f32.mrf.mxu0
    %v64 = vadd.f32 %v36, %v63
    %65 = vdwg.mxu0
    %v66 = vmax.f32 %v64, 0.0
    %v67 = vld [vmem:[%s3] sm:$0xff]
    %v68 = vld [vmem:[%s3 + $0x8] sm:$0xff]
    %v69 = vld [vmem:[%s3 + $0x10] sm:$0xf]
    %v70 = vld [vmem:[%s4] sm:$0x1]
    %v72 = vperm.slane %v70, 0
    %vm74 = vcmask 162816
    %v76 = vsel %vm74, %v66, 0
    %vm78 = vcmask 1043456
    %v80 = vsel %vm78, %v69, 0
    %82 = vmatpush.msra.mxu0 0.0
    %83 = vmatpush.msra.mxu0 0.0
    %84 = vmatpush.msra.mxu0 0.0
    %85 = vmatpush.msra.mxu0 0.0
    %86 = vmatpush.msra.mxu0 0.0
    %87 = vmatpush.msra.mxu0 0.0
    %88 = vmatpush.msra.mxu0 0.0
    %89 = vmatpush.msra.mxu0 0.0
    %90 = vmatpush.msra.mxu0 0.0
    %91 = vmatpush.msra.mxu0 0.0
    %92 = vmatpush.msra.mxu0 0.0
    %93 = vmatpush.msra.mxu0 0.0
    %94 = vmatpush.msra.mxu0 0.0
    %95 = vmatpush.msra.mxu0 %v80
    %96 = vmatpush.msra.mxu0 %v68
    %97 = vmatpush.msra.mxu0 %v67
    %98 = vmatmul.f32.gmra.mxu0 %v76
    %v99 = vpop.f32.mrf.mxu0
    %v100 = vadd.f32 %v72, %v99
    %101 = vdwg.mxu0
    %v102 = vmax.f32 %v100, 0.0
    %v103 = vld [vmem:[%s5] sm:$0xff]
    %v104 = vld [vmem:[%s5 + $0x8] sm:$0x3]
    %v105 = vld [vmem:[%s6] sm:$0x1]
    %v107 = vperm.slane %v105, 0
    %vm109 = vcmask 80896
    %v111 = vsel %vm109, %v102, 0
    %v114 = vsel %vm42, %v104, 0
    %116 = vmatpush.msra.mxu0 0.0
    %117 = vmatpush.msra.mxu0 0.0
    %118 = vmatpush.msra.mxu0 0.0
    %119 = vmatpush.msra.mxu0 0.0
    %120 = vmatpush.msra.mxu0 0.0
    %121 = vmatpush.msra.mxu0 0.0
    %122 = vmatpush.msra.mxu0 0.0
    %123 = vmatpush.msra.mxu0 0.0
    %124 = vmatpush.msra.mxu0 0.0
    %125 = vmatpush.msra.mxu0 0.0
    %126 = vmatpush.msra.mxu0 0.0
    %127 = vmatpush.msra.mxu0 0.0
    %128 = vmatpush.msra.mxu0 0.0
    %129 = vmatpush.msra.mxu0 0.0
    %130 = vmatpush.msra.mxu0 %v114
    %131 = vmatpush.msra.mxu0 %v103
    %132 = vmatmul.f32.gmra.mxu0 %v111
    %v133 = vpop.f32.mrf.mxu0
    %v134 = vadd.f32 %v107, %v133
    %135 = vdwg.mxu0
    %136 = vst [vmem:[#allocation2] sm:$0xff] %v134
    // Predicated region
    $region30: #{tpu_custom_call.1} parent=1 // pred_check
      _
    $region31: #{tpu_custom_call.1} parent=1 // pred_check_branch
      %138 = sbr.rel (0) target = $region33
    $region32: #{tpu_custom_call.1} parent=1 // pred_region
      %140 = vsyncadd [#allocation3], 0
      %s142 = sshll.u32 [#allocation2], 4
      %s143 = int_to_ptr.vmem [resolvable:$true] %s142
      %s144 = sshll.u32 %s7, 4
      %s145 = int_to_ptr.hbm [resolvable:$true] %s144
      %147 = dma.vmem_to_hbm [thread:$0]  %s143, 128, %s145, [#allocation3]
    $region33: #{tpu_custom_call.1} parent=1 // pred_fallthru
      _
    // Predicated region
    $region34: #{tpu_custom_call.1} parent=1 // pred_check
      _
    $region35: #{tpu_custom_call.1} parent=1 // pred_check_branch
      %149 = sbr.rel (0) target = $region37
    $region36: #{tpu_custom_call.1} parent=1 // pred_region
      %151 = dma.done [#allocation3], 128
    $region37: #{tpu_custom_call.1} parent=1 // pred_fallthru
      _
    %152 = vsyncpa [#allocation3], 1

</llo_original>
